<compile_context>
chip_gen: v5e
topology: v5e:2x2
jax: 0.10.0
libtpu: 0.0.40
codegen_flags: <defaults>
</compile_context>

<pallas_src>
import functools

import jax
import jax.numpy as jnp
from jax.experimental import pallas as pl
from jax.experimental.pallas import tpu as pltpu

_LANE = 128     # lane width (last dim)
_SUBLANE = 8    # sublane width (second-to-last dim)


def _round_up(n: int, m: int) -> int:
    return ((n + m - 1) // m) * m


def _default_batch_tile() -> int:
    """256 rows to fill the 256x256 MXU on v6e/v7x; 128 matches v5e's 128x128."""
    try:
        kind = jax.devices()[0].device_kind.lower()
    except Exception:
        return 256
    if "v5 lite" in kind or "v5e" in kind or "v5litepod" in kind:
        return 128
    return 256


def _vmem_cap_bytes() -> int:
    try:
        return int(pltpu.get_tpu_info().vmem_capacity_bytes)
    except Exception:
        return 64 << 20  # conservative (v7x per-TC VMEM)


def _fused_mlp_kernel(x_ref, *refs, num_layers: int, dims_p, n_chunk: int):
    """Fused MLP forward for one batch tile.

    refs = (w0, b0, ..., w_{L-1}, b_{L-1}, o_ref, act_a, act_b)
      x_ref:   (TB, D0_pad) f32
      w_i:     (D{i}_pad, D{i+1}_pad) bf16   b_i: (1, D{i+1}_pad) f32
      o_ref:   (TB, DL_pad) f32
      act_a/b: (TB, Dhid_max) bf16 ping-pong scratch for hidden activations.
    Zero-padded weight rows/cols + zero bias pad keep padded columns exactly 0
    through ReLU, so the valid slice matches the unpadded math.
    """
    o_ref = refs[2 * num_layers]
    act_refs = (refs[2 * num_layers + 1], refs[2 * num_layers + 2])

    for layer in range(num_layers):
        w_ref = refs[2 * layer]
        b_ref = refs[2 * layer + 1]
        d_in = dims_p[layer]
        d_out = dims_p[layer + 1]
        last = layer == num_layers - 1

        in_ref = x_ref if layer == 0 else act_refs[(layer - 1) % 2]
        out_ref = o_ref if last else act_refs[layer % 2]

        # bf16 LHS for the MXU (no-op for bf16 scratch, a cast for f32 x).
        lhs = in_ref[:, :d_in].astype(jnp.bfloat16)

        # N-chunked output: each <=n_chunk-lane slab goes straight to VMEM,
        # bounding vreg pressure instead of carrying full-width h in vregs.
        for n0 in range(0, d_out, n_chunk):
            nc = min(n_chunk, d_out - n0)
            acc = jnp.dot(lhs, w_ref[:, n0:n0 + nc],
                          preferred_element_type=jnp.float32)
            acc = acc + b_ref[:, n0:n0 + nc]
            if not last:
                acc = jnp.maximum(acc, 0.0)
            out_ref[:, n0:n0 + nc] = acc.astype(out_ref.dtype)


def prepare_mlp_params(params, *, weight_dtype=jnp.bfloat16):
    """Pad (and cast) all (W, b) ONCE; cache the result across forward calls.

    params: list of (W[in, out] f32, b[out] f32).
    Returns a dict with padded bf16 weights / f32 biases and dim metadata.
    """
    dims = [params[0][0].shape[0]] + [w.shape[1] for (w, _) in params]
    dims_p = tuple(_round_up(d, _LANE) for d in dims)
    padded = []
    for i, (w, b) in enumerate(params):
        din, dout = w.shape
        w_p = (jnp.zeros((dims_p[i], dims_p[i + 1]), weight_dtype)
               .at[:din, :dout].set(w.astype(weight_dtype)))
        b_p = (jnp.zeros((1, dims_p[i + 1]), jnp.float32)
               .at[0, :dout].set(b.astype(jnp.float32)))
        padded.append((w_p, b_p))
    return {"padded": padded, "dims": tuple(dims), "dims_p": dims_p}


def mlp_forward(x, prepared, *, batch_tile=None, n_chunk: int = 512):
    """Matches MLP.forward: Linear+ReLU for all layers except the last (Linear).

    x: (B, Din) f32; prepared: output of prepare_mlp_params (padded weights
    cached across calls).  Runs a single fused Pallas kernel.
    """
    padded = prepared["padded"]
    dims = prepared["dims"]
    dims_p = prepared["dims_p"]
    num_layers = len(padded)

    B, Din = x.shape
    assert Din == dims[0], (Din, dims[0])
    Din_p, Dout_p = dims_p[0], dims_p[-1]
    Dout = dims[-1]

    if batch_tile is None:
        batch_tile = _default_batch_tile()
    n_chunk = _round_up(max(n_chunk, _LANE), _LANE)

    TB = min(_round_up(B, _SUBLANE), batch_tile)
    B_p = _round_up(B, TB)

    # Only the activation is padded per call; weights were pre-padded.
    x_p = jnp.zeros((B_p, Din_p), x.dtype).at[:B, :Din].set(x)

    flat_wb = []
    for (w_p, b_p) in padded:
        flat_wb.extend([w_p, b_p])

    # Ping-pong bf16 scratch covering the widest hidden layer.
    hid_widths = dims_p[1:num_layers]
    Dhid_max = max(hid_widths) if hid_widths else _LANE
    scratch_shapes = [pltpu.VMEM((TB, Dhid_max), jnp.bfloat16),
                      pltpu.VMEM((TB, Dhid_max), jnp.bfloat16)]

    # Explicit VMEM budget: weights x 1 buffer + act tiles x 2 buffers + scratch.
    cap = _vmem_cap_bytes()
    w_bytes = sum(int(w.size) * w.dtype.itemsize + int(b.size) * b.dtype.itemsize
                  for (w, b) in padded)
    if w_bytes > int(0.7 * cap):
        # TODO(synk): stream K-chunks of large weights from HBM instead.
        raise NotImplementedError("MLP weights too large for VMEM-resident kernel")
    act_bytes = (TB * Din_p * 4) * 2 + (TB * Dout_p * 4) * 2 + 2 * TB * Dhid_max * 2
    vmem_limit = int(min(cap, max(2 * (w_bytes + act_bytes) + (8 << 20), 32 << 20)))

    kernel = functools.partial(_fused_mlp_kernel, num_layers=num_layers,
                               dims_p=dims_p, n_chunk=n_chunk)

    def _in_specs(single_buffer_weights: bool):
        specs = [pl.BlockSpec((TB, Din_p), lambda i: (i, 0))]
        for (w_p, b_p) in padded:
            if single_buffer_weights:
                # Constant index_map across the grid -> no need to double-buffer.
                specs.append(pl.BlockSpec(w_p.shape, lambda i: (0, 0),
                                          pipeline_mode=pl.Buffered(1)))
                specs.append(pl.BlockSpec(b_p.shape, lambda i: (0, 0),
                                          pipeline_mode=pl.Buffered(1)))
            else:
                specs.append(pl.BlockSpec(w_p.shape, lambda i: (0, 0)))
                specs.append(pl.BlockSpec(b_p.shape, lambda i: (0, 0)))
        return specs

    def _call(single_buffer_weights: bool):
        return pl.pallas_call(
            kernel,
            out_shape=jax.ShapeDtypeStruct((B_p, Dout_p), x.dtype),
            grid=(B_p // TB,),
            in_specs=_in_specs(single_buffer_weights),
            out_specs=pl.BlockSpec((TB, Dout_p), lambda i: (i, 0)),
            scratch_shapes=scratch_shapes,
            compiler_params=pltpu.CompilerParams(
                dimension_semantics=("parallel",),
                vmem_limit_bytes=vmem_limit,
            ),
        )(x_p, *flat_wb)

    try:
        out_p = _call(True)
    except Exception:
        # Conservative fallback if this JAX build rejects Buffered(1) specs.
        out_p = _call(False)

    return out_p[:B, :Dout]


def init_mlp_params(key, input_dim, hidden_dims, output_dim):
    """Deterministic PyTorch-style (kaiming-uniform-ish) init.

    Returns list of (W[in, out], b[out]) per layer (stored (in, out) so the
    kernel computes y = x @ W + b with no transpose).
    """
    dims = [input_dim] + list(hidden_dims) + [output_dim]
    params = []
    for din, dout in zip(dims[:-1], dims[1:]):
        kw, kb, key = jax.random.split(key, 3)
        bound = 1.0 / jnp.sqrt(jnp.float32(din))
        w = jax.random.uniform(kw, (din, dout), jnp.float32, -bound, bound)
        b = jax.random.uniform(kb, (dout,), jnp.float32, -bound, bound)
        params.append((w, b))
    return params


if __name__ == "__main__":
    key = jax.random.PRNGKey(0)

    batch = 8
    input_dim = 32
    hidden_dims = [64, 32]
    output_dim = 16

    kx, kp = jax.random.split(key)
    x = jax.random.normal(kx, (batch, input_dim), jnp.float32)
    params = init_mlp_params(kp, input_dim, hidden_dims, output_dim)

    prepared = prepare_mlp_params(params)          # pad/cast once, reuse per call
    out = mlp_forward(x, prepared)
    out = jax.block_until_ready(out)
    assert out.shape == (batch, output_dim)

    # Reference 1: matches the kernel's precision (bf16 operands, f32 accum).
    ref_mx = x
    for i, (w, b) in enumerate(params):
        ref_mx = jnp.dot(ref_mx.astype(jnp.bfloat16), w.astype(jnp.bfloat16),
                         preferred_element_type=jnp.float32) + b
        if i < len(params) - 1:
            ref_mx = jnp.maximum(ref_mx, 0.0)
    assert jnp.allclose(out, ref_mx, atol=1e-3, rtol=1e-3)

    # Reference 2: full-f32 semantics sanity check (loose tol for bf16 MXU).
    ref_f32 = x
    for i, (w, b) in enumerate(params):
        ref_f32 = ref_f32 @ w + b
        if i < len(params) - 1:
            ref_f32 = jnp.maximum(ref_f32, 0.0)
    assert jnp.allclose(out, ref_f32, atol=1e-1, rtol=1e-1)

    print("KERNEL_OK")
</pallas_src>

<mosaic_0001>
module attributes {stable_mosaic.version = 11 : i64} {
  func.func @_fused_mlp_kernel(%arg0: i32, %arg1: memref<8x128xf32, #tpu.memory_space<vmem>>, %arg2: memref<128x128xbf16, #tpu.memory_space<vmem>>, %arg3: memref<1x128xf32, #tpu.memory_space<vmem>>, %arg4: memref<128x128xbf16, #tpu.memory_space<vmem>>, %arg5: memref<1x128xf32, #tpu.memory_space<vmem>>, %arg6: memref<128x128xbf16, #tpu.memory_space<vmem>>, %arg7: memref<1x128xf32, #tpu.memory_space<vmem>>, %arg8: memref<8x128xf32, #tpu.memory_space<vmem>>, %arg9: memref<8x128xbf16, #tpu.memory_space<vmem>>, %arg10: memref<8x128xbf16, #tpu.memory_space<vmem>>) attributes {dimension_semantics = [#tpu.dimension_semantics<parallel>], iteration_bounds = array<i64: 1>, scalar_prefetch = 0 : i64, scratch_operands = 2 : i64, tpu.core_type = #tpu.core_type<tc>, window_params = [{transform_indices = @transform_0, window_bounds = array<i64: 8, 128>}, {pipeline_mode = #tpu.pipeline_mode<synchronous>, transform_indices = @transform_1, window_bounds = array<i64: 128, 128>}, {pipeline_mode = #tpu.pipeline_mode<synchronous>, transform_indices = @transform_2, window_bounds = array<i64: 1, 128>}, {pipeline_mode = #tpu.pipeline_mode<synchronous>, transform_indices = @transform_3, window_bounds = array<i64: 128, 128>}, {pipeline_mode = #tpu.pipeline_mode<synchronous>, transform_indices = @transform_4, window_bounds = array<i64: 1, 128>}, {pipeline_mode = #tpu.pipeline_mode<synchronous>, transform_indices = @transform_5, window_bounds = array<i64: 128, 128>}, {pipeline_mode = #tpu.pipeline_mode<synchronous>, transform_indices = @transform_6, window_bounds = array<i64: 1, 128>}, {transform_indices = @transform_7, window_bounds = array<i64: 8, 128>}]} {
    %c0 = arith.constant 0 : index
    %c0_0 = arith.constant 0 : index
    %0 = vector.load %arg1[%c0, %c0_0] : memref<8x128xf32, #tpu.memory_space<vmem>>, vector<8x128xf32>
    %1 = arith.truncf %0 : vector<8x128xf32> to vector<8x128xbf16>
    %c0_1 = arith.constant 0 : index
    %c0_2 = arith.constant 0 : index
    %2 = vector.load %arg2[%c0_1, %c0_2] : memref<128x128xbf16, #tpu.memory_space<vmem>>, vector<128x128xbf16>
    %cst = arith.constant dense<0.000000e+00> : vector<8x128xf32>
    %3 = tpu.matmul %1, %2, %cst {dimension_numbers = #tpu.dot_dimension_numbers<[1], [0], [0], [1], [0, 0, 1, 1], [], []>} : vector<8x128xbf16>, vector<128x128xbf16>, vector<8x128xf32> -> vector<8x128xf32>
    %c0_3 = arith.constant 0 : index
    %c0_4 = arith.constant 0 : index
    %4 = vector.load %arg3[%c0_3, %c0_4] : memref<1x128xf32, #tpu.memory_space<vmem>>, vector<1x128xf32>
    %5 = vector.broadcast %4 : vector<1x128xf32> to vector<8x128xf32>
    %6 = arith.addf %3, %5 : vector<8x128xf32>
    %cst_5 = arith.constant 0.000000e+00 : f32
    %7 = vector.broadcast %cst_5 : f32 to vector<8x128xf32>
    %8 = arith.maximumf %6, %7 : vector<8x128xf32>
    %9 = arith.truncf %8 : vector<8x128xf32> to vector<8x128xbf16>
    %c0_6 = arith.constant 0 : index
    %c0_7 = arith.constant 0 : index
    %10 = vector.load %arg9[%c0_6, %c0_7] : memref<8x128xbf16, #tpu.memory_space<vmem>>, vector<8x128xbf16>
    tpu.vector_store %arg9[%c0_6, %c0_7], %9 {strides = array<i32>} : memref<8x128xbf16, #tpu.memory_space<vmem>>, vector<8x128xbf16>,
    %c0_8 = arith.constant 0 : index
    %c0_9 = arith.constant 0 : index
    %11 = vector.load %arg9[%c0_8, %c0_9] : memref<8x128xbf16, #tpu.memory_space<vmem>>, vector<8x128xbf16>
    %c0_10 = arith.constant 0 : index
    %c0_11 = arith.constant 0 : index
    %12 = vector.load %arg4[%c0_10, %c0_11] : memref<128x128xbf16, #tpu.memory_space<vmem>>, vector<128x128xbf16>
    %cst_12 = arith.constant dense<0.000000e+00> : vector<8x128xf32>
    %13 = tpu.matmul %11, %12, %cst_12 {dimension_numbers = #tpu.dot_dimension_numbers<[1], [0], [0], [1], [0, 0, 1, 1], [], []>} : vector<8x128xbf16>, vector<128x128xbf16>, vector<8x128xf32> -> vector<8x128xf32>
    %c0_13 = arith.constant 0 : index
    %c0_14 = arith.constant 0 : index
    %14 = vector.load %arg5[%c0_13, %c0_14] : memref<1x128xf32, #tpu.memory_space<vmem>>, vector<1x128xf32>
    %15 = vector.broadcast %14 : vector<1x128xf32> to vector<8x128xf32>
    %16 = arith.addf %13, %15 : vector<8x128xf32>
    %cst_15 = arith.constant 0.000000e+00 : f32
    %17 = vector.broadcast %cst_15 : f32 to vector<8x128xf32>
    %18 = arith.maximumf %16, %17 : vector<8x128xf32>
    %19 = arith.truncf %18 : vector<8x128xf32> to vector<8x128xbf16>
    %c0_16 = arith.constant 0 : index
    %c0_17 = arith.constant 0 : index
    %20 = vector.load %arg10[%c0_16, %c0_17] : memref<8x128xbf16, #tpu.memory_space<vmem>>, vector<8x128xbf16>
    tpu.vector_store %arg10[%c0_16, %c0_17], %19 {strides = array<i32>} : memref<8x128xbf16, #tpu.memory_space<vmem>>, vector<8x128xbf16>,
    %c0_18 = arith.constant 0 : index
    %c0_19 = arith.constant 0 : index
    %21 = vector.load %arg10[%c0_18, %c0_19] : memref<8x128xbf16, #tpu.memory_space<vmem>>, vector<8x128xbf16>
    %c0_20 = arith.constant 0 : index
    %c0_21 = arith.constant 0 : index
    %22 = vector.load %arg6[%c0_20, %c0_21] : memref<128x128xbf16, #tpu.memory_space<vmem>>, vector<128x128xbf16>
    %cst_22 = arith.constant dense<0.000000e+00> : vector<8x128xf32>
    %23 = tpu.matmul %21, %22, %cst_22 {dimension_numbers = #tpu.dot_dimension_numbers<[1], [0], [0], [1], [0, 0, 1, 1], [], []>} : vector<8x128xbf16>, vector<128x128xbf16>, vector<8x128xf32> -> vector<8x128xf32>
    %c0_23 = arith.constant 0 : index
    %c0_24 = arith.constant 0 : index
    %24 = vector.load %arg7[%c0_23, %c0_24] : memref<1x128xf32, #tpu.memory_space<vmem>>, vector<1x128xf32>
    %25 = vector.broadcast %24 : vector<1x128xf32> to vector<8x128xf32>
    %26 = arith.addf %23, %25 : vector<8x128xf32>
    %c0_25 = arith.constant 0 : index
    %c0_26 = arith.constant 0 : index
    %27 = vector.load %arg8[%c0_25, %c0_26] : memref<8x128xf32, #tpu.memory_space<vmem>>, vector<8x128xf32>
    tpu.vector_store %arg8[%c0_25, %c0_26], %26 {strides = array<i32>} : memref<8x128xf32, #tpu.memory_space<vmem>>, vector<8x128xf32>,
    return
  }
  func.func @transform_0(%arg0: i32) -> (i32, i32) {
    %c0_i32 = arith.constant 0 : i32
    %c0_i32_0 = arith.constant 0 : i32
    return %arg0, %c0_i32 : i32, i32
  }
  func.func @transform_1(%arg0: i32) -> (i32, i32) {
    %c0_i32 = arith.constant 0 : i32
    %c0_i32_0 = arith.constant 0 : i32
    %c0_i32_1 = arith.constant 0 : i32
    return %c0_i32, %c0_i32_0 : i32, i32
  }
  func.func @transform_2(%arg0: i32) -> (i32, i32) {
    %c0_i32 = arith.constant 0 : i32
    %c0_i32_0 = arith.constant 0 : i32
    %c0_i32_1 = arith.constant 0 : i32
    return %c0_i32, %c0_i32_0 : i32, i32
  }
  func.func @transform_3(%arg0: i32) -> (i32, i32) {
    %c0_i32 = arith.constant 0 : i32
    %c0_i32_0 = arith.constant 0 : i32
    %c0_i32_1 = arith.constant 0 : i32
    return %c0_i32, %c0_i32_0 : i32, i32
  }
  func.func @transform_4(%arg0: i32) -> (i32, i32) {
    %c0_i32 = arith.constant 0 : i32
    %c0_i32_0 = arith.constant 0 : i32
    %c0_i32_1 = arith.constant 0 : i32
    return %c0_i32, %c0_i32_0 : i32, i32
  }
  func.func @transform_5(%arg0: i32) -> (i32, i32) {
    %c0_i32 = arith.constant 0 : i32
    %c0_i32_0 = arith.constant 0 : i32
    %c0_i32_1 = arith.constant 0 : i32
    return %c0_i32, %c0_i32_0 : i32, i32
  }
  func.func @transform_6(%arg0: i32) -> (i32, i32) {
    %c0_i32 = arith.constant 0 : i32
    %c0_i32_0 = arith.constant 0 : i32
    %c0_i32_1 = arith.constant 0 : i32
    return %c0_i32, %c0_i32_0 : i32, i32
  }
  func.func @transform_7(%arg0: i32) -> (i32, i32) {
    %c0_i32 = arith.constant 0 : i32
    %c0_i32_0 = arith.constant 0 : i32
    return %arg0, %c0_i32 : i32, i32
  }
}

module attributes {stable_mosaic.version = 11 : i64} {
  func.func @_fused_mlp_kernel(%arg0: i32, %arg1: memref<8x128xf32, #tpu.memory_space<vmem>>, %arg2: memref<128x128xbf16, #tpu.memory_space<vmem>>, %arg3: memref<1x128xf32, #tpu.memory_space<vmem>>, %arg4: memref<128x128xbf16, #tpu.memory_space<vmem>>, %arg5: memref<1x128xf32, #tpu.memory_space<vmem>>, %arg6: memref<128x128xbf16, #tpu.memory_space<vmem>>, %arg7: memref<1x128xf32, #tpu.memory_space<vmem>>, %arg8: memref<8x128xf32, #tpu.memory_space<vmem>>, %arg9: memref<8x128xbf16, #tpu.memory_space<vmem>>, %arg10: memref<8x128xbf16, #tpu.memory_space<vmem>>) attributes {dimension_semantics = [#tpu.dimension_semantics<parallel>], iteration_bounds = array<i64: 1>, scalar_prefetch = 0 : i64, scratch_operands = 2 : i64, tpu.core_type = #tpu.core_type<tc>, window_params = [{transform_indices = @transform_0, window_bounds = array<i64: 8, 128>}, {pipeline_mode = #tpu.pipeline_mode<synchronous>, transform_indices = @transform_1, window_bounds = array<i64: 128, 128>}, {pipeline_mode = #tpu.pipeline_mode<synchronous>, transform_indices = @transform_2, window_bounds = array<i64: 1, 128>}, {pipeline_mode = #tpu.pipeline_mode<synchronous>, transform_indices = @transform_3, window_bounds = array<i64: 128, 128>}, {pipeline_mode = #tpu.pipeline_mode<synchronous>, transform_indices = @transform_4, window_bounds = array<i64: 1, 128>}, {pipeline_mode = #tpu.pipeline_mode<synchronous>, transform_indices = @transform_5, window_bounds = array<i64: 128, 128>}, {pipeline_mode = #tpu.pipeline_mode<synchronous>, transform_indices = @transform_6, window_bounds = array<i64: 1, 128>}, {transform_indices = @transform_7, window_bounds = array<i64: 8, 128>}]} {
    %c0 = arith.constant 0 : index
    %c0_0 = arith.constant 0 : index
    %0 = vector.load %arg1[%c0, %c0_0] : memref<8x128xf32, #tpu.memory_space<vmem>>, vector<8x128xf32>
    %1 = arith.truncf %0 : vector<8x128xf32> to vector<8x128xbf16>
    %c0_1 = arith.constant 0 : index
    %c0_2 = arith.constant 0 : index
    %2 = vector.load %arg2[%c0_1, %c0_2] : memref<128x128xbf16, #tpu.memory_space<vmem>>, vector<128x128xbf16>
    %cst = arith.constant dense<0.000000e+00> : vector<8x128xf32>
    %3 = tpu.matmul %1, %2, %cst {dimension_numbers = #tpu.dot_dimension_numbers<[1], [0], [0], [1], [0, 0, 1, 1], [], []>} : vector<8x128xbf16>, vector<128x128xbf16>, vector<8x128xf32> -> vector<8x128xf32>
    %c0_3 = arith.constant 0 : index
    %c0_4 = arith.constant 0 : index
    %4 = vector.load %arg3[%c0_3, %c0_4] : memref<1x128xf32, #tpu.memory_space<vmem>>, vector<1x128xf32>
    %5 = vector.broadcast %4 : vector<1x128xf32> to vector<8x128xf32>
    %6 = arith.addf %3, %5 : vector<8x128xf32>
    %cst_5 = arith.constant 0.000000e+00 : f32
    %7 = vector.broadcast %cst_5 : f32 to vector<8x128xf32>
    %8 = arith.maximumf %6, %7 : vector<8x128xf32>
    %9 = arith.truncf %8 : vector<8x128xf32> to vector<8x128xbf16>
    %c0_6 = arith.constant 0 : index
    %c0_7 = arith.constant 0 : index
    %10 = vector.load %arg9[%c0_6, %c0_7] : memref<8x128xbf16, #tpu.memory_space<vmem>>, vector<8x128xbf16>
    tpu.vector_store %arg9[%c0_6, %c0_7], %9 {strides = array<i32>} : memref<8x128xbf16, #tpu.memory_space<vmem>>, vector<8x128xbf16>,
    %c0_8 = arith.constant 0 : index
    %c0_9 = arith.constant 0 : index
    %11 = vector.load %arg9[%c0_8, %c0_9] : memref<8x128xbf16, #tpu.memory_space<vmem>>, vector<8x128xbf16>
    %c0_10 = arith.constant 0 : index
    %c0_11 = arith.constant 0 : index
    %12 = vector.load %arg4[%c0_10, %c0_11] : memref<128x128xbf16, #tpu.memory_space<vmem>>, vector<128x128xbf16>
    %cst_12 = arith.constant dense<0.000000e+00> : vector<8x128xf32>
    %13 = tpu.matmul %11, %12, %cst_12 {dimension_numbers = #tpu.dot_dimension_numbers<[1], [0], [0], [1], [0, 0, 1, 1], [], []>} : vector<8x128xbf16>, vector<128x128xbf16>, vector<8x128xf32> -> vector<8x128xf32>
    %c0_13 = arith.constant 0 : index
    %c0_14 = arith.constant 0 : index
    %14 = vector.load %arg5[%c0_13, %c0_14] : memref<1x128xf32, #tpu.memory_space<vmem>>, vector<1x128xf32>
    %15 = vector.broadcast %14 : vector<1x128xf32> to vector<8x128xf32>
    %16 = arith.addf %13, %15 : vector<8x128xf32>
    %cst_15 = arith.constant 0.000000e+00 : f32
    %17 = vector.broadcast %cst_15 : f32 to vector<8x128xf32>
    %18 = arith.maximumf %16, %17 : vector<8x128xf32>
    %19 = arith.truncf %18 : vector<8x128xf32> to vector<8x128xbf16>
    %c0_16 = arith.constant 0 : index
    %c0_17 = arith.constant 0 : index
    %20 = vector.load %arg10[%c0_16, %c0_17] : memref<8x128xbf16, #tpu.memory_space<vmem>>, vector<8x128xbf16>
    tpu.vector_store %arg10[%c0_16, %c0_17], %19 {strides = array<i32>} : memref<8x128xbf16, #tpu.memory_space<vmem>>, vector<8x128xbf16>,
    %c0_18 = arith.constant 0 : index
    %c0_19 = arith.constant 0 : index
    %21 = vector.load %arg10[%c0_18, %c0_19] : memref<8x128xbf16, #tpu.memory_space<vmem>>, vector<8x128xbf16>
    %c0_20 = arith.constant 0 : index
    %c0_21 = arith.constant 0 : index
    %22 = vector.load %arg6[%c0_20, %c0_21] : memref<128x128xbf16, #tpu.memory_space<vmem>>, vector<128x128xbf16>
    %cst_22 = arith.constant dense<0.000000e+00> : vector<8x128xf32>
    %23 = tpu.matmul %21, %22, %cst_22 {dimension_numbers = #tpu.dot_dimension_numbers<[1], [0], [0], [1], [0, 0, 1, 1], [], []>} : vector<8x128xbf16>, vector<128x128xbf16>, vector<8x128xf32> -> vector<8x128xf32>
    %c0_23 = arith.constant 0 : index
    %c0_24 = arith.constant 0 : index
    %24 = vector.load %arg7[%c0_23, %c0_24] : memref<1x128xf32, #tpu.memory_space<vmem>>, vector<1x128xf32>
    %25 = vector.broadcast %24 : vector<1x128xf32> to vector<8x128xf32>
    %26 = arith.addf %23, %25 : vector<8x128xf32>
    %c0_25 = arith.constant 0 : index
    %c0_26 = arith.constant 0 : index
    %27 = vector.load %arg8[%c0_25, %c0_26] : memref<8x128xf32, #tpu.memory_space<vmem>>, vector<8x128xf32>
    tpu.vector_store %arg8[%c0_25, %c0_26], %26 {strides = array<i32>} : memref<8x128xf32, #tpu.memory_space<vmem>>, vector<8x128xf32>,
    return
  }
  func.func @transform_0(%arg0: i32) -> (i32, i32) {
    %c0_i32 = arith.constant 0 : i32
    %c0_i32_0 = arith.constant 0 : i32
    return %arg0, %c0_i32 : i32, i32
  }
  func.func @transform_1(%arg0: i32) -> (i32, i32) {
    %c0_i32 = arith.constant 0 : i32
    %c0_i32_0 = arith.constant 0 : i32
    %c0_i32_1 = arith.constant 0 : i32
    return %c0_i32, %c0_i32_0 : i32, i32
  }
  func.func @transform_2(%arg0: i32) -> (i32, i32) {
    %c0_i32 = arith.constant 0 : i32
    %c0_i32_0 = arith.constant 0 : i32
    %c0_i32_1 = arith.constant 0 : i32
    return %c0_i32, %c0_i32_0 : i32, i32
  }
  func.func @transform_3(%arg0: i32) -> (i32, i32) {
    %c0_i32 = arith.constant 0 : i32
    %c0_i32_0 = arith.constant 0 : i32
    %c0_i32_1 = arith.constant 0 : i32
    return %c0_i32, %c0_i32_0 : i32, i32
  }
  func.func @transform_4(%arg0: i32) -> (i32, i32) {
    %c0_i32 = arith.constant 0 : i32
    %c0_i32_0 = arith.constant 0 : i32
    %c0_i32_1 = arith.constant 0 : i32
    return %c0_i32, %c0_i32_0 : i32, i32
  }
  func.func @transform_5(%arg0: i32) -> (i32, i32) {
    %c0_i32 = arith.constant 0 : i32
    %c0_i32_0 = arith.constant 0 : i32
    %c0_i32_1 = arith.constant 0 : i32
    return %c0_i32, %c0_i32_0 : i32, i32
  }
  func.func @transform_6(%arg0: i32) -> (i32, i32) {
    %c0_i32 = arith.constant 0 : i32
    %c0_i32_0 = arith.constant 0 : i32
    %c0_i32_1 = arith.constant 0 : i32
    return %c0_i32, %c0_i32_0 : i32, i32
  }
  func.func @transform_7(%arg0: i32) -> (i32, i32) {
    %c0_i32 = arith.constant 0 : i32
    %c0_i32_0 = arith.constant 0 : i32
    return %arg0, %c0_i32 : i32, i32
  }
}

</mosaic_0001>

<llo_original>
// kernel: tpu_custom_call.1
$region0: #{tpu_custom_call.1}
  #allocation0 [shape = 'u32[]', space=smem, size = 0x4, offset = 0x4, fixed_abs, tag = 'smem constant byte address 0x4 - core index']
  #allocation1 [shape = 'u32[72,128]{1,0:T(1,128)}', space=vmem, size = 0x9000, scoped, tag = 'internal scratch']
  #allocation2 [shape = 'bf16[8,128]{1,0:T(8,128)(2,1)}', space=vmem, size = 0x800, scoped, tag = 'scratch operand']
  #allocation3 [shape = 'bf16[8,128]{1,0:T(8,128)(2,1)}', space=vmem, size = 0x800, scoped, tag = 'scratch operand']
  %s0 = inlined_call_operand.hbm [shape: f32[8,128], index: 0, kind: input, shape index: {}]
  %s1 = inlined_call_operand.hbm [shape: bf16[128,128], index: 1, kind: input, shape index: {}]
  %s2 = inlined_call_operand.vmem [shape: f32[1,128], index: 2, kind: input, shape index: {}]
  %s3 = inlined_call_operand.hbm [shape: bf16[128,128], index: 3, kind: input, shape index: {}]
  %s4 = inlined_call_operand.vmem [shape: f32[1,128], index: 4, kind: input, shape index: {}]
  %s5 = inlined_call_operand.hbm [shape: bf16[128,128], index: 5, kind: input, shape index: {}]
  %s6 = inlined_call_operand.vmem [shape: f32[1,128], index: 6, kind: input, shape index: {}]
  %s7 = inlined_call_operand.hbm [shape: f32[8,128], index: 7, kind: output, shape index: {}]
  %s8 = sld [smem:[#allocation0]]
  $region54: #{tpu_custom_call.1} parent=0
    _
  %s10 = ssub.s32 1, %s8
  %s11 = scalar_select 0, %s10, %s8
  $region1: #{tpu_custom_call.1} parent=0
    #allocation4 [shape = 'u8[4096]{0}', space=vmem, size = 0x1000, scoped, tag = 'input window, operand 0, single buffered']
    #allocation5 [shape = 's32[1]{0}', space=sflag, size = 0x4, scoped, tag = 'scoped memory for tpu_custom_call.1']
    #allocation6 [shape = 's32[1]{0}', space=sflag, size = 0x4, scoped, tag = 'scoped memory for tpu_custom_call.1']
    #allocation7 [shape = 'u8[32768]{0}', space=vmem, size = 0x8000, scoped, tag = 'input window, operand 1, single buffered']
    #allocation8 [shape = 's32[1]{0}', space=sflag, size = 0x4, scoped, tag = 'scoped memory for tpu_custom_call.1']
    #allocation9 [shape = 'u8[32768]{0}', space=vmem, size = 0x8000, scoped, tag = 'input window, operand 3, single buffered']
    #allocation10 [shape = 'u8[32768]{0}', space=vmem, size = 0x8000, scoped, tag = 'input window, operand 5, single buffered']
    #allocation11 [shape = 's32[1]{0}', space=sflag, size = 0x4, scoped, tag = 'scoped memory for tpu_custom_call.1']
    #allocation12 [shape = 'u8[4096]{0}', space=vmem, size = 0x1000, scoped, tag = 'output window, operand 0, single buffered']
    %12 = vsyncpa [#allocation5], 0
    %13 = vsyncpa [#allocation8], 0
    %14 = vsyncpa [#allocation11], 0
    %15 = vsyncpa [#allocation6], 0
    // Predicated region
    $region2: #{tpu_custom_call.1} parent=1 // pred_check
      _
    $region3: #{tpu_custom_call.1} parent=1 // pred_check_branch
      %17 = sbr.rel (0) target = $region5
    $region4: #{tpu_custom_call.1} parent=1 // pred_region
      %19 = vsyncadd [#allocation5], 0
      %s21 = sshll.u32 %s0, 4
      %s22 = int_to_ptr.hbm [resolvable:$true] %s21
      %s23 = sshll.u32 [#allocation4], 4
      %s24 = int_to_ptr.vmem [resolvable:$true] %s23
      %26 = dma.hbm_to_vmem [thread:$0]  %s22, 128, %s24, [#allocation5]
    $region5: #{tpu_custom_call.1} parent=1 // pred_fallthru
      _
    // Predicated region
    $region6: #{tpu_custom_call.1} parent=1 // pred_check
      _
    $region7: #{tpu_custom_call.1} parent=1 // pred_check_branch
      %28 = sbr.rel (0) target = $region9
    $region8: #{tpu_custom_call.1} parent=1 // pred_region
      %30 = vsyncadd [#allocation8], 0
      %s31 = sshll.u32 %s1, 4
      %s32 = int_to_ptr.hbm [resolvable:$true] %s31
      %s33 = sshll.u32 [#allocation7], 4
      %s34 = int_to_ptr.vmem [resolvable:$true] %s33
      %39 = dma.hbm_to_vmem [thread:$0]  %s32, 1024, %s34, [#allocation8], 64, 64, 4
    $region9: #{tpu_custom_call.1} parent=1 // pred_fallthru
      _
    // Predicated region
    $region10: #{tpu_custom_call.1} parent=1 // pred_check
      _
    $region11: #{tpu_custom_call.1} parent=1 // pred_check_branch
      %41 = sbr.rel (0) target = $region13
    $region12: #{tpu_custom_call.1} parent=1 // pred_region
      _
    $region13: #{tpu_custom_call.1} parent=1 // pred_fallthru
      _
    // Predicated region
    $region14: #{tpu_custom_call.1} parent=1 // pred_check
      _
    $region15: #{tpu_custom_call.1} parent=1 // pred_check_branch
      %43 = sbr.rel (0) target = $region17
    $region16: #{tpu_custom_call.1} parent=1 // pred_region
      %45 = vsyncadd [#allocation8], 0
      %s46 = sshll.u32 %s3, 4
      %s47 = int_to_ptr.hbm [resolvable:$true] %s46
      %s48 = sshll.u32 [#allocation9], 4
      %s49 = int_to_ptr.vmem [resolvable:$true] %s48
      %54 = dma.hbm_to_vmem [thread:$0]  %s47, 1024, %s49, [#allocation8], 64, 64, 4
    $region17: #{tpu_custom_call.1} parent=1 // pred_fallthru
      _
    // Predicated region
    $region18: #{tpu_custom_call.1} parent=1 // pred_check
      _
    $region19: #{tpu_custom_call.1} parent=1 // pred_check_branch
      %56 = sbr.rel (0) target = $region21
    $region20: #{tpu_custom_call.1} parent=1 // pred_region
      _
    $region21: #{tpu_custom_call.1} parent=1 // pred_fallthru
      _
    // Predicated region
    $region22: #{tpu_custom_call.1} parent=1 // pred_check
      _
    $region23: #{tpu_custom_call.1} parent=1 // pred_check_branch
      %58 = sbr.rel (0) target = $region25
    $region24: #{tpu_custom_call.1} parent=1 // pred_region
      %60 = vsyncadd [#allocation11], 0
      %s61 = sshll.u32 %s5, 4
      %s62 = int_to_ptr.hbm [resolvable:$true] %s61
      %s63 = sshll.u32 [#allocation10], 4
      %s64 = int_to_ptr.vmem [resolvable:$true] %s63
      %69 = dma.hbm_to_vmem [thread:$0]  %s62, 1024, %s64, [#allocation11], 64, 64, 4
    $region25: #{tpu_custom_call.1} parent=1 // pred_fallthru
      _
    // Predicated region
    $region26: #{tpu_custom_call.1} parent=1 // pred_check
      _
    $region27: #{tpu_custom_call.1} parent=1 // pred_check_branch
      %71 = sbr.rel (0) target = $region29
    $region28: #{tpu_custom_call.1} parent=1 // pred_region
      _
    $region29: #{tpu_custom_call.1} parent=1 // pred_fallthru
      _
    // Predicated region
    $region30: #{tpu_custom_call.1} parent=1 // pred_check
      _
    $region31: #{tpu_custom_call.1} parent=1 // pred_check_branch
      %73 = sbr.rel (0) target = $region33
    $region32: #{tpu_custom_call.1} parent=1 // pred_region
      %75 = dma.done [#allocation5], 128
    $region33: #{tpu_custom_call.1} parent=1 // pred_fallthru
      _
    // Predicated region
    $region34: #{tpu_custom_call.1} parent=1 // pred_check
      _
    $region35: #{tpu_custom_call.1} parent=1 // pred_check_branch
      %77 = sbr.rel (0) target = $region37
    $region36: #{tpu_custom_call.1} parent=1 // pred_region
      %79 = dma.done [#allocation8], 1024
    $region37: #{tpu_custom_call.1} parent=1 // pred_fallthru
      _
    // Predicated region
    $region38: #{tpu_custom_call.1} parent=1 // pred_check
      _
    $region39: #{tpu_custom_call.1} parent=1 // pred_check_branch
      %81 = sbr.rel (0) target = $region41
    $region40: #{tpu_custom_call.1} parent=1 // pred_region
      %83 = dma.done [#allocation8], 1024
    $region41: #{tpu_custom_call.1} parent=1 // pred_fallthru
      _
    // Predicated region
    $region42: #{tpu_custom_call.1} parent=1 // pred_check
      _
    $region43: #{tpu_custom_call.1} parent=1 // pred_check_branch
      %85 = sbr.rel (0) target = $region45
    $region44: #{tpu_custom_call.1} parent=1 // pred_region
      %87 = dma.done [#allocation11], 1024
    $region45: #{tpu_custom_call.1} parent=1 // pred_fallthru
      _
    %v88 = vld [vmem:[#allocation4] sm:$0xff]
    %v89 = vpack.c.bf16 %v88, %v88
    %v90 = vld [vmem:[#allocation7] sm:$0xf]
    %v91 = vld [vmem:[#allocation7 + $0x4] sm:$0xf]
    %v92 = vld [vmem:[#allocation7 + $0x8] sm:$0xf]
    %v93 = vld [vmem:[#allocation7 + $0xc] sm:$0xf]
    %v94 = vld [vmem:[#allocation7 + $0x10] sm:$0xf]
    %v95 = vld [vmem:[#allocation7 + $0x14] sm:$0xf]
    %v96 = vld [vmem:[#allocation7 + $0x18] sm:$0xf]
    %v97 = vld [vmem:[#allocation7 + $0x1c] sm:$0xf]
    %v98 = vld [vmem:[#allocation7 + $0x20] sm:$0xf]
    %v99 = vld [vmem:[#allocation7 + $0x24] sm:$0xf]
    %v100 = vld [vmem:[#allocation7 + $0x28] sm:$0xf]
    %v101 = vld [vmem:[#allocation7 + $0x2c] sm:$0xf]
    %v102 = vld [vmem:[#allocation7 + $0x30] sm:$0xf]
    %v103 = vld [vmem:[#allocation7 + $0x34] sm:$0xf]
    %v104 = vld [vmem:[#allocation7 + $0x38] sm:$0xf]
    %v105 = vld [vmem:[#allocation7 + $0x3c] sm:$0xf]
    %v106 = vld [vmem:[%s2] sm:$0x1]
    %v108 = vperm.slane %v106, 0
    %v126 = vunpack.c.l.b16 %v90
    %v127 = vunpack.c.l.b16 %v91
    %v128 = vunpack.c.l.b16 %v92
    %v129 = vunpack.c.l.b16 %v93
    %v130 = vunpack.c.l.b16 %v94
    %v131 = vunpack.c.l.b16 %v95
    %v132 = vunpack.c.l.b16 %v96
    %v133 = vunpack.c.l.b16 %v97
    %v134 = vunpack.c.l.b16 %v98
    %v135 = vunpack.c.l.b16 %v99
    %v136 = vunpack.c.l.b16 %v100
    %v137 = vunpack.c.l.b16 %v101
    %v138 = vunpack.c.l.b16 %v102
    %v139 = vunpack.c.l.b16 %v103
    %v140 = vunpack.c.l.b16 %v104
    %v141 = vunpack.c.l.b16 %v105
    %v142 = vpack.c.b16 %v127, %v126
    %v143 = vpack.c.b16 %v129, %v128
    %v144 = vpack.c.b16 %v131, %v130
    %v145 = vpack.c.b16 %v133, %v132
    %v146 = vpack.c.b16 %v135, %v134
    %v147 = vpack.c.b16 %v137, %v136
    %v148 = vpack.c.b16 %v139, %v138
    %v149 = vpack.c.b16 %v141, %v140
    %158 = vmatpush.bf16.msra.mxu0 %v149
    %159 = vmatpush.bf16.msra.mxu0 %v148
    %160 = vmatpush.bf16.msra.mxu0 %v147
    %161 = vmatpush.bf16.msra.mxu0 %v146
    %162 = vmatpush.bf16.msra.mxu0 %v145
    %163 = vmatpush.bf16.msra.mxu0 %v144
    %164 = vmatpush.bf16.msra.mxu0 %v143
    %165 = vmatpush.bf16.msra.mxu0 %v142
    %166 = vmatmul.bf16.gmra.mxu0 %v89
    %v167 = vpop.f32.mrf.mxu0
    %v168 = vadd.f32 %v108, %v167
    %v169 = vpop.f32.mrf.mxu0
    %170 = vdwg.mxu0
    %v171 = vmax.f32 %v168, 0.0
    %v172 = vpack.c.bf16 %v171, %v171
    %173 = vst [vmem:[#allocation2] sm:$0xf] %v172
    %v174 = vld [vmem:[#allocation2] sm:$0xf]
    %v175 = vld [vmem:[#allocation9] sm:$0xf]
    %v176 = vld [vmem:[#allocation9 + $0x4] sm:$0xf]
    %v177 = vld [vmem:[#allocation9 + $0x8] sm:$0xf]
    %v178 = vld [vmem:[#allocation9 + $0xc] sm:$0xf]
    %v179 = vld [vmem:[#allocation9 + $0x10] sm:$0xf]
    %v180 = vld [vmem:[#allocation9 + $0x14] sm:$0xf]
    %v181 = vld [vmem:[#allocation9 + $0x18] sm:$0xf]
    %v182 = vld [vmem:[#allocation9 + $0x1c] sm:$0xf]
    %v183 = vld [vmem:[#allocation9 + $0x20] sm:$0xf]
    %v184 = vld [vmem:[#allocation9 + $0x24] sm:$0xf]
    %v185 = vld [vmem:[#allocation9 + $0x28] sm:$0xf]
    %v186 = vld [vmem:[#allocation9 + $0x2c] sm:$0xf]
    %v187 = vld [vmem:[#allocation9 + $0x30] sm:$0xf]
    %v188 = vld [vmem:[#allocation9 + $0x34] sm:$0xf]
    %v189 = vld [vmem:[#allocation9 + $0x38] sm:$0xf]
    %v190 = vld [vmem:[#allocation9 + $0x3c] sm:$0xf]
    %v191 = vld [vmem:[%s4] sm:$0x1]
    %v193 = vperm.slane %v191, 0
    %v211 = vunpack.c.l.b16 %v175
    %v212 = vunpack.c.l.b16 %v176
    %v213 = vunpack.c.l.b16 %v177
    %v214 = vunpack.c.l.b16 %v178
    %v215 = vunpack.c.l.b16 %v179
    %v216 = vunpack.c.l.b16 %v180
    %v217 = vunpack.c.l.b16 %v181
    %v218 = vunpack.c.l.b16 %v182
    %v219 = vunpack.c.l.b16 %v183
    %v220 = vunpack.c.l.b16 %v184
    %v221 = vunpack.c.l.b16 %v185
    %v222 = vunpack.c.l.b16 %v186
    %v223 = vunpack.c.l.b16 %v187
    %v224 = vunpack.c.l.b16 %v188
    %v225 = vunpack.c.l.b16 %v189
    %v226 = vunpack.c.l.b16 %v190
    %v227 = vpack.c.b16 %v212, %v211
    %v228 = vpack.c.b16 %v214, %v213
    %v229 = vpack.c.b16 %v216, %v215
    %v230 = vpack.c.b16 %v218, %v217
    %v231 = vpack.c.b16 %v220, %v219
    %v232 = vpack.c.b16 %v222, %v221
    %v233 = vpack.c.b16 %v224, %v223
    %v234 = vpack.c.b16 %v226, %v225
    %243 = vmatpush.bf16.msra.mxu0 %v234
    %244 = vmatpush.bf16.msra.mxu0 %v233
    %245 = vmatpush.bf16.msra.mxu0 %v232
    %246 = vmatpush.bf16.msra.mxu0 %v231
    %247 = vmatpush.bf16.msra.mxu0 %v230
    %248 = vmatpush.bf16.msra.mxu0 %v229
    %249 = vmatpush.bf16.msra.mxu0 %v228
    %250 = vmatpush.bf16.msra.mxu0 %v227
    %251 = vmatmul.bf16.gmra.mxu0 %v174
    %v252 = vpop.f32.mrf.mxu0
    %v253 = vadd.f32 %v193, %v252
    %v254 = vpop.f32.mrf.mxu0
    %255 = vdwg.mxu0
    %v256 = vmax.f32 %v253, 0.0
    %v257 = vpack.c.bf16 %v256, %v256
    %258 = vst [vmem:[#allocation3] sm:$0xf] %v257
    %v259 = vld [vmem:[#allocation3] sm:$0xf]
    %v260 = vld [vmem:[#allocation10] sm:$0xf]
    %v261 = vld [vmem:[#allocation10 + $0x4] sm:$0xf]
    %v262 = vld [vmem:[#allocation10 + $0x8] sm:$0xf]
    %v263 = vld [vmem:[#allocation10 + $0xc] sm:$0xf]
    %v264 = vld [vmem:[#allocation10 + $0x10] sm:$0xf]
    %v265 = vld [vmem:[#allocation10 + $0x14] sm:$0xf]
    %v266 = vld [vmem:[#allocation10 + $0x18] sm:$0xf]
    %v267 = vld [vmem:[#allocation10 + $0x1c] sm:$0xf]
    %v268 = vld [vmem:[#allocation10 + $0x20] sm:$0xf]
    %v269 = vld [vmem:[#allocation10 + $0x24] sm:$0xf]
    %v270 = vld [vmem:[#allocation10 + $0x28] sm:$0xf]
    %v271 = vld [vmem:[#allocation10 + $0x2c] sm:$0xf]
    %v272 = vld [vmem:[#allocation10 + $0x30] sm:$0xf]
    %v273 = vld [vmem:[#allocation10 + $0x34] sm:$0xf]
    %v274 = vld [vmem:[#allocation10 + $0x38] sm:$0xf]
    %v275 = vld [vmem:[#allocation10 + $0x3c] sm:$0xf]
    %v276 = vld [vmem:[%s6] sm:$0x1]
    %v278 = vperm.slane %v276, 0
    %v296 = vunpack.c.l.b16 %v260
    %v297 = vunpack.c.l.b16 %v261
    %v298 = vunpack.c.l.b16 %v262
    %v299 = vunpack.c.l.b16 %v263
    %v300 = vunpack.c.l.b16 %v264
    %v301 = vunpack.c.l.b16 %v265
    %v302 = vunpack.c.l.b16 %v266
    %v303 = vunpack.c.l.b16 %v267
    %v304 = vunpack.c.l.b16 %v268
    %v305 = vunpack.c.l.b16 %v269
    %v306 = vunpack.c.l.b16 %v270
    %v307 = vunpack.c.l.b16 %v271
    %v308 = vunpack.c.l.b16 %v272
    %v309 = vunpack.c.l.b16 %v273
    %v310 = vunpack.c.l.b16 %v274
    %v311 = vunpack.c.l.b16 %v275
    %v312 = vpack.c.b16 %v297, %v296
    %v313 = vpack.c.b16 %v299, %v298
    %v314 = vpack.c.b16 %v301, %v300
    %v315 = vpack.c.b16 %v303, %v302
    %v316 = vpack.c.b16 %v305, %v304
    %v317 = vpack.c.b16 %v307, %v306
    %v318 = vpack.c.b16 %v309, %v308
    %v319 = vpack.c.b16 %v311, %v310
    %328 = vmatpush.bf16.msra.mxu0 %v319
    %329 = vmatpush.bf16.msra.mxu0 %v318
    %330 = vmatpush.bf16.msra.mxu0 %v317
    %331 = vmatpush.bf16.msra.mxu0 %v316
    %332 = vmatpush.bf16.msra.mxu0 %v315
    %333 = vmatpush.bf16.msra.mxu0 %v314
    %334 = vmatpush.bf16.msra.mxu0 %v313
    %335 = vmatpush.bf16.msra.mxu0 %v312
    %336 = vmatmul.bf16.gmra.mxu0 %v259
    %v337 = vpop.f32.mrf.mxu0
    %v338 = vadd.f32 %v278, %v337
    %v339 = vpop.f32.mrf.mxu0
    %340 = vdwg.mxu0
    %341 = vst [vmem:[#allocation12] sm:$0xff] %v338
    // Predicated region
    $region46: #{tpu_custom_call.1} parent=1 // pred_check
      _
    $region47: #{tpu_custom_call.1} parent=1 // pred_check_branch
      %343 = sbr.rel (0) target = $region49
    $region48: #{tpu_custom_call.1} parent=1 // pred_region
      %345 = vsyncadd [#allocation6], 0
      %s347 = sshll.u32 [#allocation12], 4
      %s348 = int_to_ptr.vmem [resolvable:$true] %s347
      %s349 = sshll.u32 %s7, 4
      %s350 = int_to_ptr.hbm [resolvable:$true] %s349
      %352 = dma.vmem_to_hbm [thread:$0]  %s348, 128, %s350, [#allocation6]
    $region49: #{tpu_custom_call.1} parent=1 // pred_fallthru
      _
    // Predicated region
    $region50: #{tpu_custom_call.1} parent=1 // pred_check
      _
    $region51: #{tpu_custom_call.1} parent=1 // pred_check_branch
      %354 = sbr.rel (0) target = $region53
    $region52: #{tpu_custom_call.1} parent=1 // pred_region
      %356 = dma.done [#allocation6], 128
    $region53: #{tpu_custom_call.1} parent=1 // pred_fallthru
      _
    %357 = vsyncpa [#allocation5], 1
    %358 = vsyncpa [#allocation8], 1
    %359 = vsyncpa [#allocation11], 1
    %360 = vsyncpa [#allocation6], 1

// kernel: tpu_custom_call.1
$region0: #{tpu_custom_call.1}
  #allocation0 [shape = 'u32[]', space=smem, size = 0x4, offset = 0x4, fixed_abs, tag = 'smem constant byte address 0x4 - core index']
  #allocation1 [shape = 'u32[72,128]{1,0:T(1,128)}', space=vmem, size = 0x9000, scoped, tag = 'internal scratch']
  #allocation2 [shape = 'bf16[8,128]{1,0:T(8,128)(2,1)}', space=vmem, size = 0x800, scoped, tag = 'scratch operand']
  #allocation3 [shape = 'bf16[8,128]{1,0:T(8,128)(2,1)}', space=vmem, size = 0x800, scoped, tag = 'scratch operand']
  %s0 = inlined_call_operand.hbm [shape: f32[8,128], index: 0, kind: input, shape index: {}]
  %s1 = inlined_call_operand.hbm [shape: bf16[128,128], index: 1, kind: input, shape index: {}]
  %s2 = inlined_call_operand.vmem [shape: f32[1,128], index: 2, kind: input, shape index: {}]
  %s3 = inlined_call_operand.hbm [shape: bf16[128,128], index: 3, kind: input, shape index: {}]
  %s4 = inlined_call_operand.vmem [shape: f32[1,128], index: 4, kind: input, shape index: {}]
  %s5 = inlined_call_operand.hbm [shape: bf16[128,128], index: 5, kind: input, shape index: {}]
  %s6 = inlined_call_operand.vmem [shape: f32[1,128], index: 6, kind: input, shape index: {}]
  %s7 = inlined_call_operand.hbm [shape: f32[8,128], index: 7, kind: output, shape index: {}]
  %s8 = sld [smem:[#allocation0]]
  $region54: #{tpu_custom_call.1} parent=0
    _
  %s10 = ssub.s32 1, %s8
  %s11 = scalar_select 0, %s10, %s8
  $region1: #{tpu_custom_call.1} parent=0
    #allocation4 [shape = 'u8[4096]{0}', space=vmem, size = 0x1000, scoped, tag = 'input window, operand 0, single buffered']
    #allocation5 [shape = 's32[1]{0}', space=sflag, size = 0x4, scoped, tag = 'scoped memory for tpu_custom_call.1']
    #allocation6 [shape = 's32[1]{0}', space=sflag, size = 0x4, scoped, tag = 'scoped memory for tpu_custom_call.1']
    #allocation7 [shape = 'u8[32768]{0}', space=vmem, size = 0x8000, scoped, tag = 'input window, operand 1, single buffered']
    #allocation8 [shape = 's32[1]{0}', space=sflag, size = 0x4, scoped, tag = 'scoped memory for tpu_custom_call.1']
    #allocation9 [shape = 'u8[32768]{0}', space=vmem, size = 0x8000, scoped, tag = 'input window, operand 3, single buffered']
    #allocation10 [shape = 'u8[32768]{0}', space=vmem, size = 0x8000, scoped, tag = 'input window, operand 5, single buffered']
    #allocation11 [shape = 's32[1]{0}', space=sflag, size = 0x4, scoped, tag = 'scoped memory for tpu_custom_call.1']
    #allocation12 [shape = 'u8[4096]{0}', space=vmem, size = 0x1000, scoped, tag = 'output window, operand 0, single buffered']
    %12 = vsyncpa [#allocation5], 0
    %13 = vsyncpa [#allocation8], 0
    %14 = vsyncpa [#allocation11], 0
    %15 = vsyncpa [#allocation6], 0
    // Predicated region
    $region2: #{tpu_custom_call.1} parent=1 // pred_check
      _
    $region3: #{tpu_custom_call.1} parent=1 // pred_check_branch
      %17 = sbr.rel (0) target = $region5
    $region4: #{tpu_custom_call.1} parent=1 // pred_region
      %19 = vsyncadd [#allocation5], 0
      %s21 = sshll.u32 %s0, 4
      %s22 = int_to_ptr.hbm [resolvable:$true] %s21
      %s23 = sshll.u32 [#allocation4], 4
      %s24 = int_to_ptr.vmem [resolvable:$true] %s23
      %26 = dma.hbm_to_vmem [thread:$0]  %s22, 128, %s24, [#allocation5]
    $region5: #{tpu_custom_call.1} parent=1 // pred_fallthru
      _
    // Predicated region
    $region6: #{tpu_custom_call.1} parent=1 // pred_check
      _
    $region7: #{tpu_custom_call.1} parent=1 // pred_check_branch
      %28 = sbr.rel (0) target = $region9
    $region8: #{tpu_custom_call.1} parent=1 // pred_region
      %30 = vsyncadd [#allocation8], 0
      %s31 = sshll.u32 %s1, 4
      %s32 = int_to_ptr.hbm [resolvable:$true] %s31
      %s33 = sshll.u32 [#allocation7], 4
      %s34 = int_to_ptr.vmem [resolvable:$true] %s33
      %39 = dma.hbm_to_vmem [thread:$0]  %s32, 1024, %s34, [#allocation8], 64, 64, 4
    $region9: #{tpu_custom_call.1} parent=1 // pred_fallthru
      _
    // Predicated region
    $region10: #{tpu_custom_call.1} parent=1 // pred_check
      _
    $region11: #{tpu_custom_call.1} parent=1 // pred_check_branch
      %41 = sbr.rel (0) target = $region13
    $region12: #{tpu_custom_call.1} parent=1 // pred_region
      _
    $region13: #{tpu_custom_call.1} parent=1 // pred_fallthru
      _
    // Predicated region
    $region14: #{tpu_custom_call.1} parent=1 // pred_check
      _
    $region15: #{tpu_custom_call.1} parent=1 // pred_check_branch
      %43 = sbr.rel (0) target = $region17
    $region16: #{tpu_custom_call.1} parent=1 // pred_region
      %45 = vsyncadd [#allocation8], 0
      %s46 = sshll.u32 %s3, 4
      %s47 = int_to_ptr.hbm [resolvable:$true] %s46
      %s48 = sshll.u32 [#allocation9], 4
      %s49 = int_to_ptr.vmem [resolvable:$true] %s48
      %54 = dma.hbm_to_vmem [thread:$0]  %s47, 1024, %s49, [#allocation8], 64, 64, 4
    $region17: #{tpu_custom_call.1} parent=1 // pred_fallthru
      _
    // Predicated region
    $region18: #{tpu_custom_call.1} parent=1 // pred_check
      _
    $region19: #{tpu_custom_call.1} parent=1 // pred_check_branch
      %56 = sbr.rel (0) target = $region21
    $region20: #{tpu_custom_call.1} parent=1 // pred_region
      _
    $region21: #{tpu_custom_call.1} parent=1 // pred_fallthru
      _
    // Predicated region
    $region22: #{tpu_custom_call.1} parent=1 // pred_check
      _
    $region23: #{tpu_custom_call.1} parent=1 // pred_check_branch
      %58 = sbr.rel (0) target = $region25
    $region24: #{tpu_custom_call.1} parent=1 // pred_region
      %60 = vsyncadd [#allocation11], 0
      %s61 = sshll.u32 %s5, 4
      %s62 = int_to_ptr.hbm [resolvable:$true] %s61
      %s63 = sshll.u32 [#allocation10], 4
      %s64 = int_to_ptr.vmem [resolvable:$true] %s63
      %69 = dma.hbm_to_vmem [thread:$0]  %s62, 1024, %s64, [#allocation11], 64, 64, 4
    $region25: #{tpu_custom_call.1} parent=1 // pred_fallthru
      _
    // Predicated region
    $region26: #{tpu_custom_call.1} parent=1 // pred_check
      _
    $region27: #{tpu_custom_call.1} parent=1 // pred_check_branch
      %71 = sbr.rel (0) target = $region29
    $region28: #{tpu_custom_call.1} parent=1 // pred_region
      _
    $region29: #{tpu_custom_call.1} parent=1 // pred_fallthru
      _
    // Predicated region
    $region30: #{tpu_custom_call.1} parent=1 // pred_check
      _
    $region31: #{tpu_custom_call.1} parent=1 // pred_check_branch
      %73 = sbr.rel (0) target = $region33
    $region32: #{tpu_custom_call.1} parent=1 // pred_region
      %75 = dma.done [#allocation5], 128
    $region33: #{tpu_custom_call.1} parent=1 // pred_fallthru
      _
    // Predicated region
    $region34: #{tpu_custom_call.1} parent=1 // pred_check
      _
    $region35: #{tpu_custom_call.1} parent=1 // pred_check_branch
      %77 = sbr.rel (0) target = $region37
    $region36: #{tpu_custom_call.1} parent=1 // pred_region
      %79 = dma.done [#allocation8], 1024
    $region37: #{tpu_custom_call.1} parent=1 // pred_fallthru
      _
    // Predicated region
    $region38: #{tpu_custom_call.1} parent=1 // pred_check
      _
    $region39: #{tpu_custom_call.1} parent=1 // pred_check_branch
      %81 = sbr.rel (0) target = $region41
    $region40: #{tpu_custom_call.1} parent=1 // pred_region
      %83 = dma.done [#allocation8], 1024
    $region41: #{tpu_custom_call.1} parent=1 // pred_fallthru
      _
    // Predicated region
    $region42: #{tpu_custom_call.1} parent=1 // pred_check
      _
    $region43: #{tpu_custom_call.1} parent=1 // pred_check_branch
      %85 = sbr.rel (0) target = $region45
    $region44: #{tpu_custom_call.1} parent=1 // pred_region
      %87 = dma.done [#allocation11], 1024
    $region45: #{tpu_custom_call.1} parent=1 // pred_fallthru
      _
    %v88 = vld [vmem:[#allocation4] sm:$0xff]
    %v89 = vpack.c.bf16 %v88, %v88
    %v90 = vld [vmem:[#allocation7] sm:$0xf]
    %v91 = vld [vmem:[#allocation7 + $0x4] sm:$0xf]
    %v92 = vld [vmem:[#allocation7 + $0x8] sm:$0xf]
    %v93 = vld [vmem:[#allocation7 + $0xc] sm:$0xf]
    %v94 = vld [vmem:[#allocation7 + $0x10] sm:$0xf]
    %v95 = vld [vmem:[#allocation7 + $0x14] sm:$0xf]
    %v96 = vld [vmem:[#allocation7 + $0x18] sm:$0xf]
    %v97 = vld [vmem:[#allocation7 + $0x1c] sm:$0xf]
    %v98 = vld [vmem:[#allocation7 + $0x20] sm:$0xf]
    %v99 = vld [vmem:[#allocation7 + $0x24] sm:$0xf]
    %v100 = vld [vmem:[#allocation7 + $0x28] sm:$0xf]
    %v101 = vld [vmem:[#allocation7 + $0x2c] sm:$0xf]
    %v102 = vld [vmem:[#allocation7 + $0x30] sm:$0xf]
    %v103 = vld [vmem:[#allocation7 + $0x34] sm:$0xf]
    %v104 = vld [vmem:[#allocation7 + $0x38] sm:$0xf]
    %v105 = vld [vmem:[#allocation7 + $0x3c] sm:$0xf]
    %v106 = vld [vmem:[%s2] sm:$0x1]
    %v108 = vperm.slane %v106, 0
    %v126 = vunpack.c.l.b16 %v90
    %v127 = vunpack.c.l.b16 %v91
    %v128 = vunpack.c.l.b16 %v92
    %v129 = vunpack.c.l.b16 %v93
    %v130 = vunpack.c.l.b16 %v94
    %v131 = vunpack.c.l.b16 %v95
    %v132 = vunpack.c.l.b16 %v96
    %v133 = vunpack.c.l.b16 %v97
    %v134 = vunpack.c.l.b16 %v98
    %v135 = vunpack.c.l.b16 %v99
    %v136 = vunpack.c.l.b16 %v100
    %v137 = vunpack.c.l.b16 %v101
    %v138 = vunpack.c.l.b16 %v102
    %v139 = vunpack.c.l.b16 %v103
    %v140 = vunpack.c.l.b16 %v104
    %v141 = vunpack.c.l.b16 %v105
    %v142 = vpack.c.b16 %v127, %v126
    %v143 = vpack.c.b16 %v129, %v128
    %v144 = vpack.c.b16 %v131, %v130
    %v145 = vpack.c.b16 %v133, %v132
    %v146 = vpack.c.b16 %v135, %v134
    %v147 = vpack.c.b16 %v137, %v136
    %v148 = vpack.c.b16 %v139, %v138
    %v149 = vpack.c.b16 %v141, %v140
    %158 = vmatpush.bf16.msra.mxu0 %v149
    %159 = vmatpush.bf16.msra.mxu0 %v148
    %160 = vmatpush.bf16.msra.mxu0 %v147
    %161 = vmatpush.bf16.msra.mxu0 %v146
    %162 = vmatpush.bf16.msra.mxu0 %v145
    %163 = vmatpush.bf16.msra.mxu0 %v144
    %164 = vmatpush.bf16.msra.mxu0 %v143
    %165 = vmatpush.bf16.msra.mxu0 %v142
    %166 = vmatmul.bf16.gmra.mxu0 %v89
    %v167 = vpop.f32.mrf.mxu0
    %v168 = vadd.f32 %v108, %v167
    %v169 = vpop.f32.mrf.mxu0
    %170 = vdwg.mxu0
    %v171 = vmax.f32 %v168, 0.0
    %v172 = vpack.c.bf16 %v171, %v171
    %173 = vst [vmem:[#allocation2] sm:$0xf] %v172
    %v174 = vld [vmem:[#allocation2] sm:$0xf]
    %v175 = vld [vmem:[#allocation9] sm:$0xf]
    %v176 = vld [vmem:[#allocation9 + $0x4] sm:$0xf]
    %v177 = vld [vmem:[#allocation9 + $0x8] sm:$0xf]
    %v178 = vld [vmem:[#allocation9 + $0xc] sm:$0xf]
    %v179 = vld [vmem:[#allocation9 + $0x10] sm:$0xf]
    %v180 = vld [vmem:[#allocation9 + $0x14] sm:$0xf]
    %v181 = vld [vmem:[#allocation9 + $0x18] sm:$0xf]
    %v182 = vld [vmem:[#allocation9 + $0x1c] sm:$0xf]
    %v183 = vld [vmem:[#allocation9 + $0x20] sm:$0xf]
    %v184 = vld [vmem:[#allocation9 + $0x24] sm:$0xf]
    %v185 = vld [vmem:[#allocation9 + $0x28] sm:$0xf]
    %v186 = vld [vmem:[#allocation9 + $0x2c] sm:$0xf]
    %v187 = vld [vmem:[#allocation9 + $0x30] sm:$0xf]
    %v188 = vld [vmem:[#allocation9 + $0x34] sm:$0xf]
    %v189 = vld [vmem:[#allocation9 + $0x38] sm:$0xf]
    %v190 = vld [vmem:[#allocation9 + $0x3c] sm:$0xf]
    %v191 = vld [vmem:[%s4] sm:$0x1]
    %v193 = vperm.slane %v191, 0
    %v211 = vunpack.c.l.b16 %v175
    %v212 = vunpack.c.l.b16 %v176
    %v213 = vunpack.c.l.b16 %v177
    %v214 = vunpack.c.l.b16 %v178
    %v215 = vunpack.c.l.b16 %v179
    %v216 = vunpack.c.l.b16 %v180
    %v217 = vunpack.c.l.b16 %v181
    %v218 = vunpack.c.l.b16 %v182
    %v219 = vunpack.c.l.b16 %v183
    %v220 = vunpack.c.l.b16 %v184
    %v221 = vunpack.c.l.b16 %v185
    %v222 = vunpack.c.l.b16 %v186
    %v223 = vunpack.c.l.b16 %v187
    %v224 = vunpack.c.l.b16 %v188
    %v225 = vunpack.c.l.b16 %v189
    %v226 = vunpack.c.l.b16 %v190
    %v227 = vpack.c.b16 %v212, %v211
    %v228 = vpack.c.b16 %v214, %v213
    %v229 = vpack.c.b16 %v216, %v215
    %v230 = vpack.c.b16 %v218, %v217
    %v231 = vpack.c.b16 %v220, %v219
    %v232 = vpack.c.b16 %v222, %v221
    %v233 = vpack.c.b16 %v224, %v223
    %v234 = vpack.c.b16 %v226, %v225
    %243 = vmatpush.bf16.msra.mxu0 %v234
    %244 = vmatpush.bf16.msra.mxu0 %v233
    %245 = vmatpush.bf16.msra.mxu0 %v232
    %246 = vmatpush.bf16.msra.mxu0 %v231
    %247 = vmatpush.bf16.msra.mxu0 %v230
    %248 = vmatpush.bf16.msra.mxu0 %v229
    %249 = vmatpush.bf16.msra.mxu0 %v228
    %250 = vmatpush.bf16.msra.mxu0 %v227
    %251 = vmatmul.bf16.gmra.mxu0 %v174
    %v252 = vpop.f32.mrf.mxu0
    %v253 = vadd.f32 %v193, %v252
    %v254 = vpop.f32.mrf.mxu0
    %255 = vdwg.mxu0
    %v256 = vmax.f32 %v253, 0.0
    %v257 = vpack.c.bf16 %v256, %v256
    %258 = vst [vmem:[#allocation3] sm:$0xf] %v257
    %v259 = vld [vmem:[#allocation3] sm:$0xf]
    %v260 = vld [vmem:[#allocation10] sm:$0xf]
    %v261 = vld [vmem:[#allocation10 + $0x4] sm:$0xf]
    %v262 = vld [vmem:[#allocation10 + $0x8] sm:$0xf]
    %v263 = vld [vmem:[#allocation10 + $0xc] sm:$0xf]
    %v264 = vld [vmem:[#allocation10 + $0x10] sm:$0xf]
    %v265 = vld [vmem:[#allocation10 + $0x14] sm:$0xf]
    %v266 = vld [vmem:[#allocation10 + $0x18] sm:$0xf]
    %v267 = vld [vmem:[#allocation10 + $0x1c] sm:$0xf]
    %v268 = vld [vmem:[#allocation10 + $0x20] sm:$0xf]
    %v269 = vld [vmem:[#allocation10 + $0x24] sm:$0xf]
    %v270 = vld [vmem:[#allocation10 + $0x28] sm:$0xf]
    %v271 = vld [vmem:[#allocation10 + $0x2c] sm:$0xf]
    %v272 = vld [vmem:[#allocation10 + $0x30] sm:$0xf]
    %v273 = vld [vmem:[#allocation10 + $0x34] sm:$0xf]
    %v274 = vld [vmem:[#allocation10 + $0x38] sm:$0xf]
    %v275 = vld [vmem:[#allocation10 + $0x3c] sm:$0xf]
    %v276 = vld [vmem:[%s6] sm:$0x1]
    %v278 = vperm.slane %v276, 0
    %v296 = vunpack.c.l.b16 %v260
    %v297 = vunpack.c.l.b16 %v261
    %v298 = vunpack.c.l.b16 %v262
    %v299 = vunpack.c.l.b16 %v263
    %v300 = vunpack.c.l.b16 %v264
    %v301 = vunpack.c.l.b16 %v265
    %v302 = vunpack.c.l.b16 %v266
    %v303 = vunpack.c.l.b16 %v267
    %v304 = vunpack.c.l.b16 %v268
    %v305 = vunpack.c.l.b16 %v269
    %v306 = vunpack.c.l.b16 %v270
    %v307 = vunpack.c.l.b16 %v271
    %v308 = vunpack.c.l.b16 %v272
    %v309 = vunpack.c.l.b16 %v273
    %v310 = vunpack.c.l.b16 %v274
    %v311 = vunpack.c.l.b16 %v275
    %v312 = vpack.c.b16 %v297, %v296
    %v313 = vpack.c.b16 %v299, %v298
    %v314 = vpack.c.b16 %v301, %v300
    %v315 = vpack.c.b16 %v303, %v302
    %v316 = vpack.c.b16 %v305, %v304
    %v317 = vpack.c.b16 %v307, %v306
    %v318 = vpack.c.b16 %v309, %v308
    %v319 = vpack.c.b16 %v311, %v310
    %328 = vmatpush.bf16.msra.mxu0 %v319
    %329 = vmatpush.bf16.msra.mxu0 %v318
    %330 = vmatpush.bf16.msra.mxu0 %v317
    %331 = vmatpush.bf16.msra.mxu0 %v316
    %332 = vmatpush.bf16.msra.mxu0 %v315
    %333 = vmatpush.bf16.msra.mxu0 %v314
    %334 = vmatpush.bf16.msra.mxu0 %v313
    %335 = vmatpush.bf16.msra.mxu0 %v312
    %336 = vmatmul.bf16.gmra.mxu0 %v259
    %v337 = vpop.f32.mrf.mxu0
    %v338 = vadd.f32 %v278, %v337
    %v339 = vpop.f32.mrf.mxu0
    %340 = vdwg.mxu0
    %341 = vst [vmem:[#allocation12] sm:$0xff] %v338
    // Predicated region
    $region46: #{tpu_custom_call.1} parent=1 // pred_check
      _
    $region47: #{tpu_custom_call.1} parent=1 // pred_check_branch
      %343 = sbr.rel (0) target = $region49
    $region48: #{tpu_custom_call.1} parent=1 // pred_region
      %345 = vsyncadd [#allocation6], 0
      %s347 = sshll.u32 [#allocation12], 4
      %s348 = int_to_ptr.vmem [resolvable:$true] %s347
      %s349 = sshll.u32 %s7, 4
      %s350 = int_to_ptr.hbm [resolvable:$true] %s349
      %352 = dma.vmem_to_hbm [thread:$0]  %s348, 128, %s350, [#allocation6]
    $region49: #{tpu_custom_call.1} parent=1 // pred_fallthru
      _
    // Predicated region
    $region50: #{tpu_custom_call.1} parent=1 // pred_check
      _
    $region51: #{tpu_custom_call.1} parent=1 // pred_check_branch
      %354 = sbr.rel (0) target = $region53
    $region52: #{tpu_custom_call.1} parent=1 // pred_region
      %356 = dma.done [#allocation6], 128
    $region53: #{tpu_custom_call.1} parent=1 // pred_fallthru
      _
    %357 = vsyncpa [#allocation5], 1
    %358 = vsyncpa [#allocation8], 1
    %359 = vsyncpa [#allocation11], 1
    %360 = vsyncpa [#allocation6], 1

</llo_original>
